<compile_context>
chip_gen: v7x
topology: tpu7x:2x2x1
jax: 0.10.0
libtpu: 0.0.40
codegen_flags: <defaults>
</compile_context>

<pallas_src>
import functools
import math

import jax
import jax.numpy as jnp
from jax.experimental import pallas as pl
from jax.experimental.pallas import tpu as pltpu

LEAKY_SLOPE = 0.2


# ---------------------------------------------------------------------------
# helpers
# ---------------------------------------------------------------------------
def _pick_tile(n, target, mult=1):
    """Largest divisor of n that is <= target and a multiple of `mult`.
    Falls back to any divisor (mult==1) or the full extent (always legal)."""
    if n <= target:
        return n
    for cand in range(min(target, n), 0, -1):
        if n % cand == 0 and cand % mult == 0:
            return cand
    if mult > 1:
        return n
    for cand in range(min(target, n), 0, -1):
        if n % cand == 0:
            return cand
    return n


def _chip_defaults():
    """Per-generation tile targets derived from the actual chip."""
    vmem = 128 * 1024 * 1024
    try:
        vmem = int(pltpu.get_tpu_info().vmem_capacity_bytes)
    except Exception:
        pass
    kind = ""
    try:
        kind = jax.devices()[0].device_kind.lower()
    except Exception:
        pass
    small_vmem = vmem <= 96 * 1024 * 1024            # v7x: 64 MiB per core
    return {
        "vmem_limit": int(min(vmem * 3 // 4, 100 * 1024 * 1024)),
        "pw_tile": 2048,                             # qkv matmul rows per tile
        "tlq": 256 if small_vmem else 512,           # attention q rows per tile
        "row_elems": 1024 if small_vmem else 2048,   # conv TH*W target
        "use_im2col": "v5" not in kind,              # v5e: nine K=C dots instead
    }


# ---------------------------------------------------------------------------
# 1x1 q/k/v projection: row-tiled matmul (+bias) kernel
# ---------------------------------------------------------------------------
def _matmul_bias_kernel(x_ref, w_ref, b_ref, o_ref):
    x = x_ref[...].astype(jnp.bfloat16)                 # bf16 MXU operands
    acc = jnp.dot(x, w_ref[...], preferred_element_type=jnp.float32)
    o_ref[...] = (acc + b_ref[...]).astype(o_ref.dtype)


def pointwise_conv(x_flat, w, b, *, tile_target=2048,
                   out_dtype=jnp.bfloat16, vmem_limit=None):
    """1x1 conv as a row-tiled matmul.  x_flat: (N, Cin) bf16, w: (Cin, Cout) bf16."""
    n, cin = x_flat.shape
    cout = w.shape[1]
    tn = _pick_tile(n, tile_target, mult=8)
    return pl.pallas_call(
        _matmul_bias_kernel,
        grid=(n // tn,),
        in_specs=[pl.BlockSpec((tn, cin), lambda i: (i, 0)),
                  pl.BlockSpec((cin, cout), lambda i: (0, 0)),
                  pl.BlockSpec((1, cout), lambda i: (0, 0))],
        out_specs=pl.BlockSpec((tn, cout), lambda i: (i, 0)),
        out_shape=jax.ShapeDtypeStruct((n, cout), out_dtype),
        compiler_params=pltpu.CompilerParams(
            dimension_semantics=("parallel",),
            vmem_limit_bytes=vmem_limit),
    )(x_flat, w, b.reshape(1, cout))


# ---------------------------------------------------------------------------
# scaled-dot-product attention (q-row tiled, full-K softmax per row)
# ---------------------------------------------------------------------------
def _attention_kernel(q_ref, kt_ref, v_ref, y_ref, *p_refs, return_attn):
    q = q_ref[0]                                        # (TLq, D) bf16, scale pre-folded
    kt = kt_ref[0]                                      # (D,  L)  bf16 (pre-transposed)
    v = v_ref[0]                                        # (L,  D)  bf16
    s = jnp.dot(q, kt, preferred_element_type=jnp.float32)        # (TLq, L)
    s = s - jnp.max(s, axis=-1, keepdims=True)
    e = jnp.exp(s)
    p = e * pl.reciprocal(jnp.sum(e, axis=-1, keepdims=True), approx=True)
    pb = p.astype(jnp.bfloat16)
    y_ref[0] = jnp.dot(pb, v, preferred_element_type=jnp.float32).astype(y_ref.dtype)
    if return_attn:
        p_refs[0][0] = pb


def scaled_dot_attention(q, kt, v, *, tlq_target=512, return_attn=True,
                         vmem_limit=None):
    """q, v: (b, L, D) bf16; kt: (b, D, L) bf16 -> (y (b,L,D) bf16, p (b,L,L) bf16|None)."""
    b, L, D = q.shape
    tlq = _pick_tile(L, tlq_target, mult=8)
    out_specs = [pl.BlockSpec((1, tlq, D), lambda i, j: (i, j, 0))]
    out_shape = [jax.ShapeDtypeStruct((b, L, D), jnp.bfloat16)]
    if return_attn:
        out_specs.append(pl.BlockSpec((1, tlq, L), lambda i, j: (i, j, 0)))
        out_shape.append(jax.ShapeDtypeStruct((b, L, L), jnp.bfloat16))
    outs = pl.pallas_call(
        functools.partial(_attention_kernel, return_attn=return_attn),
        grid=(b, L // tlq),
        in_specs=[pl.BlockSpec((1, tlq, D), lambda i, j: (i, j, 0)),
                  pl.BlockSpec((1, D, L), lambda i, j: (i, 0, 0)),
                  pl.BlockSpec((1, L, D), lambda i, j: (i, 0, 0))],
        out_specs=tuple(out_specs),
        out_shape=tuple(out_shape),
        compiler_params=pltpu.CompilerParams(
            dimension_semantics=("parallel", "parallel"),
            vmem_limit_bytes=vmem_limit),
    )(q, kt, v)
    if return_attn:
        return outs[0], outs[1]
    return outs[0], None


# ---------------------------------------------------------------------------
# 3x3 conv (+LeakyReLU, + optional residual): row-tiled, halo DMA (no jnp.pad)
# ---------------------------------------------------------------------------
def _halo_dma(x_hbm, xbuf, sems, *, TH, pad, n_th, in_dtype):
    """Double-buffered halo DMA straight from the *unpadded* NHWC tensor.
    Image borders are realised by zero-filling the top/bottom halo rows of the
    VMEM scratch (columns are zero-padded in compute), so no jnp.pad pass."""
    bi = pl.program_id(0)
    hi = pl.program_id(1)
    slot = hi % 2
    win, W, C = xbuf.shape[1], xbuf.shape[2], xbuf.shape[3]
    last_slot = (n_th - 1) % 2

    def core(h_idx, s):
        return pltpu.make_async_copy(
            x_hbm.at[bi, pl.ds(h_idx * TH, TH)],
            xbuf.at[s, pl.ds(pad, TH)],
            sems.at[s, 0])

    def top(h_idx, s):
        return pltpu.make_async_copy(
            x_hbm.at[bi, pl.ds(h_idx * TH - pad, pad)],
            xbuf.at[s, pl.ds(0, pad)],
            sems.at[s, 1])

    def bot(h_idx, s):
        return pltpu.make_async_copy(
            x_hbm.at[bi, pl.ds(h_idx * TH + TH, pad)],
            xbuf.at[s, pl.ds(pad + TH, pad)],
            sems.at[s, 2])

    # --- per-image init: zero the top border rows, prime window 0 (slot 0) ---
    @pl.when(hi == 0)
    def _():
        xbuf[0, :pad, :, :] = jnp.zeros((pad, W, C), in_dtype)
        core(0, 0).start()
        if n_th > 1:                         # python-level: grid is static
            bot(0, 0).start()

    # --- bottom image border rows are zeros (never DMA'd for the last window)
    @pl.when(hi == n_th - 1)
    def _():
        xbuf[last_slot, pad + TH:, :, :] = jnp.zeros((pad, W, C), in_dtype)

    # --- wait for the current window --------------------------------------
    core(hi, slot).wait()

    @pl.when(hi > 0)
    def _():
        top(hi, slot).wait()

    @pl.when(hi + 1 < n_th)
    def _():
        bot(hi, slot).wait()

    # --- prefetch the next window into the other slot ----------------------
    @pl.when(hi + 1 < n_th)
    def _():
        nxt = hi + 1
        s = 1 - slot
        core(nxt, s).start()
        top(nxt, s).start()                  # nxt >= 1 -> always in bounds

        @pl.when(hi + 2 < n_th)
        def _():
            bot(nxt, s).start()

    return slot


def _conv_compute(x_win, w_ref, b_ref, *, dilation, TH, W, C, use_im2col):
    """x_win: (TH+2*pad, W, C).  Zero-pads the columns, then either a single
    K=9C im2col matmul (v6e/v7x) or nine accumulated K=C dots (v5e)."""
    pad = dilation
    cout = w_ref.shape[-1]
    zcol = jnp.zeros((x_win.shape[0], pad, C), x_win.dtype)
    x_p = jnp.concatenate([zcol, x_win, zcol], axis=1)          # (win, W+2*pad, C)

    # NOTE: offset slices below could use pltpu.roll (XLU) to relieve the
    # store path; kept as plain slices for robustness.
    if use_im2col:
        cols = []
        for ky in range(3):
            row = x_p[ky * dilation:ky * dilation + TH]
            for kx in range(3):
                cols.append(row[:, kx * dilation:kx * dilation + W, :]
                            .reshape(TH * W, C))
        patches = jnp.concatenate(cols, axis=-1).astype(jnp.bfloat16)   # (TH*W, 9C)
        acc = jnp.dot(patches, w_ref[...], preferred_element_type=jnp.float32)
    else:
        acc = jnp.zeros((TH * W, cout), jnp.float32)
        idx = 0
        for ky in range(3):
            row = x_p[ky * dilation:ky * dilation + TH]
            for kx in range(3):
                patch = (row[:, kx * dilation:kx * dilation + W, :]
                         .reshape(TH * W, C).astype(jnp.bfloat16))
                acc = acc + jnp.dot(patch, w_ref[idx * C:(idx + 1) * C, :],
                                    preferred_element_type=jnp.float32)
                idx += 1
    acc = acc + b_ref[...]
    return jnp.where(acc >= 0, acc, LEAKY_SLOPE * acc)                  # LeakyReLU(0.2)


def _conv3x3_kernel(x_hbm, w_ref, b_ref, o_ref, xbuf, sems, *,
                    dilation, n_th, in_dtype, use_im2col):
    _, TH, W, cout = o_ref.shape
    C = xbuf.shape[-1]
    slot = _halo_dma(x_hbm, xbuf, sems, TH=TH, pad=dilation, n_th=n_th,
                     in_dtype=in_dtype)
    acc = _conv_compute(xbuf[slot], w_ref, b_ref, dilation=dilation,
                        TH=TH, W=W, C=C, use_im2col=use_im2col)
    o_ref[0] = acc.reshape(TH, W, cout).astype(o_ref.dtype)


def _conv3x3_res_kernel(x_hbm, w_ref, b_ref, res_ref, o_ref, xbuf, sems, *,
                        dilation, n_th, in_dtype, use_im2col):
    _, TH, W, cout = o_ref.shape
    C = xbuf.shape[-1]
    slot = _halo_dma(x_hbm, xbuf, sems, TH=TH, pad=dilation, n_th=n_th,
                     in_dtype=in_dtype)
    acc = _conv_compute(xbuf[slot], w_ref, b_ref, dilation=dilation,
                        TH=TH, W=W, C=C, use_im2col=use_im2col)
    o_ref[0] = (res_ref[0].astype(jnp.float32)
                + acc.reshape(TH, W, cout)).astype(o_ref.dtype)


def conv3x3_lrelu(x_nhwc, w_mat, b, *, dilation=1, residual=None,
                  out_dtype=jnp.bfloat16, th_target=16, use_im2col=True,
                  vmem_limit=None):
    """3x3 conv (pad == dilation) + LeakyReLU(0.2) [+ residual add],
    spatially row-tiled with a manually double-buffered halo DMA."""
    bt, H, W, C = x_nhwc.shape
    cout = w_mat.shape[-1]
    pad = dilation
    TH = _pick_tile(H, th_target)
    if H // TH > 1 and TH < pad:          # halo DMA needs TH >= pad
        TH = H
    n_th = H // TH
    win = TH + 2 * pad

    w_spec = pl.BlockSpec((9 * C, cout), lambda i, j: (0, 0))
    b_spec = pl.BlockSpec((1, cout), lambda i, j: (0, 0))
    io_spec = pl.BlockSpec((1, TH, W, cout), lambda i, j: (i, j, 0, 0))

    in_specs = [pl.BlockSpec(memory_space=pl.ANY), w_spec, b_spec]
    args = [x_nhwc, w_mat, b.reshape(1, cout)]
    common = dict(dilation=dilation, n_th=n_th, in_dtype=x_nhwc.dtype,
                  use_im2col=use_im2col)
    if residual is None:
        kern = functools.partial(_conv3x3_kernel, **common)
    else:
        kern = functools.partial(_conv3x3_res_kernel, **common)
        in_specs.append(io_spec)
        args.append(residual)

    return pl.pallas_call(
        kern,
        grid=(bt, n_th),
        in_specs=in_specs,
        out_specs=io_spec,
        out_shape=jax.ShapeDtypeStruct((bt, H, W, cout), out_dtype),
        scratch_shapes=[pltpu.VMEM((2, win, W, C), x_nhwc.dtype),
                        pltpu.SemaphoreType.DMA((2, 3))],
        compiler_params=pltpu.CompilerParams(
            dimension_semantics=("parallel", "arbitrary"),
            vmem_limit_bytes=vmem_limit),
    )(*args)


# ---------------------------------------------------------------------------
# Parameters
# ---------------------------------------------------------------------------
def init_params(key, c):
    keys = jax.random.split(key, 12)

    def conv_w(k, cout, cin, kh, kw):
        return 0.1 * jax.random.normal(k, (cout, cin, kh, kw), jnp.float32)

    def conv_b(k, cout):
        return 0.1 * jax.random.normal(k, (cout,), jnp.float32)

    return {
        "wq": conv_w(keys[0], c, c, 1, 1), "bq": conv_b(keys[1], c),
        "wk": conv_w(keys[2], c, c, 1, 1), "bk": conv_b(keys[3], c),
        "wv": conv_w(keys[4], c, c, 1, 1), "bv": conv_b(keys[5], c),
        "wo": conv_w(keys[6], c, c, 3, 3), "bo": conv_b(keys[7], c),
        "wf1": conv_w(keys[8], c, c, 3, 3), "bf1": conv_b(keys[9], c),
        "wf2": conv_w(keys[10], c, c, 3, 3), "bf2": conv_b(keys[11], c),
    }


# ---------------------------------------------------------------------------
# TransformerBlock forward (Pallas path)
# ---------------------------------------------------------------------------
def transformer_block_forward(state, patchsize, params, *,
                              pw_tile_target=None, tlq_target=None,
                              th_target=None, return_attn=True):
    x = state["x"]            # NCHW (bt, c, h, w) f32
    m = state["m"]
    b = state["b"]
    c = state["c"]
    attn_list = list(state["attn"])
    # TODO(synk): masked attention path (m is not None) not implemented; m=None here.
    assert m is None

    cfg = _chip_defaults()
    vmem_limit = cfg["vmem_limit"]
    use_im2col = cfg["use_im2col"]
    if pw_tile_target is None:
        pw_tile_target = cfg["pw_tile"]
    if tlq_target is None:
        tlq_target = cfg["tlq"]

    bt, _, h, w = x.shape
    t = bt // b
    n_groups = len(patchsize)
    d_k = c // n_groups
    if th_target is None:
        th_target = max(4, cfg["row_elems"] // w)

    # ---- single NCHW -> NHWC relayout (f32->bf16 cast fused in); the bf16
    #      tensor doubles as the residual input of output_linear.
    x_nhwc = jnp.transpose(x, (0, 2, 3, 1)).astype(jnp.bfloat16)   # (bt, h, w, c)
    x_flat = x_nhwc.reshape(bt * h * w, c)

    # ---- fold the per-group 1/sqrt(D) softmax scale into the q projection
    scale_vec = jnp.concatenate([
        jnp.full((d_k,), 1.0 / math.sqrt(d_k * height * width), jnp.float32)
        for (width, height) in patchsize])
    wq_t = params["wq"][:, :, 0, 0].T * scale_vec[None, :]
    wk_t = params["wk"][:, :, 0, 0].T
    wv_t = params["wv"][:, :, 0, 0].T
    w_qkv = jnp.concatenate([wq_t, wk_t, wv_t], axis=1).astype(jnp.bfloat16)
    b_qkv = jnp.concatenate([params["bq"] * scale_vec,
                             params["bk"], params["bv"]]).astype(jnp.float32)

    # ---- fused q/k/v 1x1-conv projection (row-tiled matmul, bf16 output)
    qkv = pointwise_conv(x_flat, w_qkv, b_qkv,
                         tile_target=pw_tile_target,
                         out_dtype=jnp.bfloat16,
                         vmem_limit=vmem_limit).reshape(bt, h, w, 3 * c)

    outputs = []
    for g, (width, height) in enumerate(patchsize):
        out_w, out_h = w // width, h // height

        # TODO(synk): fold this window-gather relayout into the attention
        # BlockSpec index_map so q/k/v are gathered by the pipeline DMA.
        def to_seq(z):                                   # -> (b, L, D)
            zg = z.reshape(b, t, out_h, height, out_w, width, d_k)
            zg = jnp.transpose(zg, (0, 1, 2, 4, 6, 3, 5))
            return zg.reshape(b, t * out_h * out_w, d_k * height * width)

        def to_seq_t(z):                                 # -> (b, D, L)  (K pre-transposed)
            zg = z.reshape(b, t, out_h, height, out_w, width, d_k)
            zg = jnp.transpose(zg, (0, 6, 3, 5, 1, 2, 4))
            return zg.reshape(b, d_k * height * width, t * out_h * out_w)

        qg = to_seq(qkv[..., g * d_k:(g + 1) * d_k])
        kgt = to_seq_t(qkv[..., c + g * d_k:c + (g + 1) * d_k])
        vg = to_seq(qkv[..., 2 * c + g * d_k:2 * c + (g + 1) * d_k])

        y, p_attn = scaled_dot_attention(qg, kgt, vg, tlq_target=tlq_target,
                                         return_attn=return_attn,
                                         vmem_limit=vmem_limit)
        if return_attn:
            attn_list.append(p_attn)

        y = y.reshape(b, t, out_h, out_w, d_k, height, width)
        y = jnp.transpose(y, (0, 1, 2, 5, 3, 6, 4)).reshape(bt, h, w, d_k)
        outputs.append(y)

    att_nhwc = jnp.concatenate(outputs, axis=-1)        # (bt, h, w, c) bf16

    def conv_w(name):
        wp = params[name]                               # (cout, cin, 3, 3)
        return (jnp.transpose(wp, (2, 3, 1, 0))
                .reshape(9 * wp.shape[1], wp.shape[0]).astype(jnp.bfloat16))

    # ---- output_linear: 3x3 conv + LeakyReLU, residual-fused with x (bf16 out)
    x1 = conv3x3_lrelu(att_nhwc, conv_w("wo"), params["bo"], dilation=1,
                       residual=x_nhwc, out_dtype=jnp.bfloat16,
                       th_target=th_target, use_im2col=use_im2col,
                       vmem_limit=vmem_limit)

    # ---- feed_forward: dilated 3x3 + LReLU, 3x3 + LReLU, residual-fused with x1
    h1 = conv3x3_lrelu(x1, conv_w("wf1"), params["bf1"], dilation=2,
                       residual=None, out_dtype=jnp.bfloat16,
                       th_target=th_target, use_im2col=use_im2col,
                       vmem_limit=vmem_limit)
    out_nhwc = conv3x3_lrelu(h1, conv_w("wf2"), params["bf2"], dilation=1,
                             residual=x1, out_dtype=jnp.float32,
                             th_target=th_target, use_im2col=use_im2col,
                             vmem_limit=vmem_limit)

    x_out = jnp.transpose(out_nhwc, (0, 3, 1, 2))
    return {"x": x_out, "m": m, "b": b, "c": c, "attn": attn_list}


# ---------------------------------------------------------------------------
# Pure-JAX reference (for verification only)
# ---------------------------------------------------------------------------
def _ref_conv(x_nchw, w_oihw, bias, padding, dilation):
    out = jax.lax.conv_general_dilated(
        x_nchw, w_oihw, (1, 1),
        ((padding, padding), (padding, padding)),
        rhs_dilation=(dilation, dilation),
        dimension_numbers=("NCHW", "OIHW", "NCHW"))
    return out + bias.reshape(1, -1, 1, 1)


def _leaky(x):
    return jnp.where(x >= 0, x, LEAKY_SLOPE * x)


def transformer_block_ref(state, patchsize, params):
    x = state["x"]
    b, c = state["b"], state["c"]
    bt, _, h, w = x.shape
    t = bt // b
    d_k = c // len(patchsize)
    q = _ref_conv(x, params["wq"], params["bq"], 0, 1)
    k = _ref_conv(x, params["wk"], params["bk"], 0, 1)
    v = _ref_conv(x, params["wv"], params["bv"], 0, 1)
    outs, attns = [], []
    for g, (width, height) in enumerate(patchsize):
        out_w, out_h = w // width, h // height

        def to_seq(z):
            zg = z[:, g * d_k:(g + 1) * d_k]
            zg = zg.reshape(b, t, d_k, out_h, height, out_w, width)
            zg = jnp.transpose(zg, (0, 1, 3, 5, 2, 4, 6))
            return zg.reshape(b, t * out_h * out_w, d_k * height * width)

        qg, kg, vg = to_seq(q), to_seq(k), to_seq(v)
        s = jnp.einsum("bld,bmd->blm", qg, kg) / math.sqrt(qg.shape[-1])
        p = jax.nn.softmax(s, axis=-1)
        y = jnp.einsum("blm,bmd->bld", p, vg)
        attns.append(p)
        y = y.reshape(b, t, out_h, out_w, d_k, height, width)
        y = jnp.transpose(y, (0, 1, 4, 2, 5, 3, 6)).reshape(bt, d_k, h, w)
        outs.append(y)
    att = jnp.concatenate(outs, axis=1)
    x1 = x + _leaky(_ref_conv(att, params["wo"], params["bo"], 1, 1))
    ff = _leaky(_ref_conv(x1, params["wf1"], params["bf1"], 2, 2))
    ff = _leaky(_ref_conv(ff, params["wf2"], params["bf2"], 1, 1))
    return x1 + ff, attns


if __name__ == "__main__":
    key = jax.random.PRNGKey(0)
    kx, kp = jax.random.split(key)

    b, t, c, h, w = 2, 2, 8, 8, 8         # small shapes; hidden = c = 8
    bt = b * t
    patchsize = [(2, 2), (4, 4)]          # d_k = c // len(patchsize) = 4

    x = jax.random.normal(kx, (bt, c, h, w), jnp.float32)
    params = init_params(kp, c)
    state = {"x": x, "m": None, "b": b, "c": c, "attn": []}

    x_ref, attn_ref = transformer_block_ref(state, patchsize, params)

    def check(out, tag):
        xo = out["x"].astype(jnp.float32)
        err = float(jnp.max(jnp.abs(xo - x_ref)))
        assert jnp.allclose(xo, x_ref, atol=8e-2, rtol=8e-2), (tag, err)
        assert len(out["attn"]) == len(attn_ref), tag
        for a, ar in zip(out["attn"], attn_ref):
            assert jnp.allclose(a.astype(jnp.float32), ar,
                                atol=5e-2, rtol=5e-2), tag

    # 1) explicit small tiles: exercises multi-row-tile halo DMA, q tiling and
    #    the multi-step row-tiled qkv matmul grid.
    out = transformer_block_forward(state, patchsize, params,
                                    pw_tile_target=128, tlq_target=16,
                                    th_target=4)
    jax.block_until_ready(out["x"])
    check(out, "small-tiles")

    # 2) auto per-chip defaults (single-tile n_th == 1 path).
    out2 = transformer_block_forward(state, patchsize, params)
    jax.block_until_ready(out2["x"])
    check(out2, "auto-tiles")

    print("KERNEL_OK")
</pallas_src>

<mosaic_0001>
module attributes {stable_mosaic.version = 11 : i64} {
  func.func @_matmul_bias_kernel(%arg0: i32, %arg1: memref<128x8xbf16, #tpu.memory_space<vmem>>, %arg2: memref<8x24xbf16, #tpu.memory_space<vmem>>, %arg3: memref<1x24xf32, #tpu.memory_space<vmem>>, %arg4: memref<128x24xbf16, #tpu.memory_space<vmem>>) attributes {dimension_semantics = [#tpu.dimension_semantics<parallel>], iteration_bounds = array<i64: 2>, scalar_prefetch = 0 : i64, scratch_operands = 0 : i64, tpu.core_type = #tpu.core_type<tc>, window_params = [{transform_indices = @transform_0, window_bounds = array<i64: 128, 8>}, {pipeline_mode = #tpu.pipeline_mode<synchronous>, transform_indices = @transform_1, window_bounds = array<i64: 8, 24>}, {pipeline_mode = #tpu.pipeline_mode<synchronous>, transform_indices = @transform_2, window_bounds = array<i64: 1, 24>}, {transform_indices = @transform_3, window_bounds = array<i64: 128, 24>}]} {
    %c0 = arith.constant 0 : index
    %c0_0 = arith.constant 0 : index
    %0 = vector.load %arg1[%c0, %c0_0] : memref<128x8xbf16, #tpu.memory_space<vmem>>, vector<128x8xbf16>
    %c0_1 = arith.constant 0 : index
    %c0_2 = arith.constant 0 : index
    %1 = vector.load %arg2[%c0_1, %c0_2] : memref<8x24xbf16, #tpu.memory_space<vmem>>, vector<8x24xbf16>
    %cst = arith.constant dense<0.000000e+00> : vector<128x24xf32>
    %2 = tpu.matmul %0, %1, %cst {dimension_numbers = #tpu.dot_dimension_numbers<[1], [0], [0], [1], [0, 0, 1, 1], [], []>} : vector<128x8xbf16>, vector<8x24xbf16>, vector<128x24xf32> -> vector<128x24xf32>
    %c0_3 = arith.constant 0 : index
    %c0_4 = arith.constant 0 : index
    %3 = vector.load %arg3[%c0_3, %c0_4] : memref<1x24xf32, #tpu.memory_space<vmem>>, vector<1x24xf32>
    %4 = vector.broadcast %3 : vector<1x24xf32> to vector<128x24xf32>
    %5 = arith.addf %2, %4 : vector<128x24xf32>
    %6 = arith.truncf %5 : vector<128x24xf32> to vector<128x24xbf16>
    %c0_5 = arith.constant 0 : index
    %c0_6 = arith.constant 0 : index
    %7 = vector.load %arg4[%c0_5, %c0_6] : memref<128x24xbf16, #tpu.memory_space<vmem>>, vector<128x24xbf16>
    tpu.vector_store %arg4[%c0_5, %c0_6], %6 {strides = array<i32>} : memref<128x24xbf16, #tpu.memory_space<vmem>>, vector<128x24xbf16>,
    return
  }
  func.func @transform_0(%arg0: i32) -> (i32, i32) {
    %c0_i32 = arith.constant 0 : i32
    %c0_i32_0 = arith.constant 0 : i32
    return %arg0, %c0_i32 : i32, i32
  }
  func.func @transform_1(%arg0: i32) -> (i32, i32) {
    %c0_i32 = arith.constant 0 : i32
    %c0_i32_0 = arith.constant 0 : i32
    %c0_i32_1 = arith.constant 0 : i32
    return %c0_i32, %c0_i32_0 : i32, i32
  }
  func.func @transform_2(%arg0: i32) -> (i32, i32) {
    %c0_i32 = arith.constant 0 : i32
    %c0_i32_0 = arith.constant 0 : i32
    %c0_i32_1 = arith.constant 0 : i32
    return %c0_i32, %c0_i32_0 : i32, i32
  }
  func.func @transform_3(%arg0: i32) -> (i32, i32) {
    %c0_i32 = arith.constant 0 : i32
    %c0_i32_0 = arith.constant 0 : i32
    return %arg0, %c0_i32 : i32, i32
  }
}

</mosaic_0001>

<llo_original>
// kernel: tpu_custom_call.1
$region0: #{tpu_custom_call.1}
  #allocation0 [shape = 'u32[]', space=smem, size = 0x4, offset = 0x4, fixed_abs, tag = 'smem constant byte address 0x4 - core index']
  #allocation1 [shape = 'u32[144,128]{1,0:T(1,128)}', space=vmem, size = 0x12000, scoped, tag = 'internal scratch']
  %s0 = inlined_call_operand.hbm [shape: bf16[256,8], index: 0, kind: input, shape index: {}]
  %s1 = inlined_call_operand.hbm [shape: bf16[8,24], index: 1, kind: input, shape index: {}]
  %s2 = inlined_call_operand.hbm [shape: f32[1,24], index: 2, kind: input, shape index: {}]
  %s3 = inlined_call_operand.hbm [shape: bf16[256,24], index: 3, kind: output, shape index: {}]
  %s4 = sld [smem:[#allocation0]]
  $region57: #{tpu_custom_call.1} parent=0
    _
  %s6 = ssub.s32 1, %s4
  %s7 = scalar_select 0, %s6, %s4
  $region1: #{tpu_custom_call.1} parent=0
    #allocation2 [shape = 'u8[65536]{0}', space=vmem, size = 0x10000, scoped, tag = 'input window, operand 0']
    #allocation3 [shape = 's32[2]{0}', space=sflag, size = 0x8, scoped, tag = 'scoped memory for tpu_custom_call.1']
    #allocation4 [shape = 's32[2]{0}', space=sflag, size = 0x8, scoped, tag = 'scoped memory for tpu_custom_call.1']
    #allocation5 [shape = 'u8[2048]{0}', space=vmem, size = 0x800, scoped, tag = 'input window, operand 1, single buffered']
    #allocation6 [shape = 's32[1]{0}', space=sflag, size = 0x4, scoped, tag = 'scoped memory for tpu_custom_call.1']
    #allocation7 [shape = 'u8[512]{0}', space=vmem, size = 0x400, scoped, tag = 'input window, operand 2, single buffered']
    #allocation8 [shape = 'u8[65536]{0}', space=vmem, size = 0x10000, scoped, tag = 'output window, operand 0']
    %8 = vsyncpa [#allocation3], 0
    %s9 = scalar_lea.sflag [#allocation3], 1
    %10 = vsyncpa %s9, 0
    %11 = vsyncpa [#allocation6], 0
    %12 = vsyncpa [#allocation4], 0
    %s13 = scalar_lea.sflag [#allocation4], 1
    %14 = vsyncpa %s13, 0
    loop: start=0, step=1, limit=4
    $region2: #{tpu_custom_call.1} parent=1 // loop_pre_header
      _
    $region3: #{tpu_custom_call.1} parent=1 // loop_header
      %s16 = sphi 0, %s20
      %p17 = scmp.ge.s32.totalorder %s16, 4
      %s26 = sphi 0, %s28
      %s29 = sphi 0, %s26
      %s30 = sphi 0, %s29
      %s46 = sphi 0, %s30
      %s50 = sphi 0, %s50
      %s52 = sphi 0, %s50
      %s53 = sphi 0, %s52
      %s67 = sphi 0, %s53
      %s71 = sphi 0, %s71
      %s73 = sphi 0, %s71
      %s74 = sphi 0, %s73
      %s88 = sphi 0, %s74
      %s94 = sphi 0, %s96
      %s97 = sphi 0, %s94
      %s98 = sphi 0, %s97
      %s114 = sphi 0, %s98
    $region4: #{tpu_custom_call.1} parent=1 // loop_header_branch
      %19 = sbr.rel (%p17) target = $region8
    $region5: #{tpu_custom_call.1} parent=1 // loop_body
      %s21 = ssub.s32 %s16, 1
      %s22 = ssub.s32 %s16, 2
      %s23 = sadd.s32 %s16, 1
      %s24 = ssub.s32 %s16, %s23
      %p25 = scmp.eq.s32.totalorder %s24, 0
      %s27 = sadd.s32 %s26, 1
      %s28 = scalar_select %p25, %s26, %s27
      %p31 = pneg %p25
      %p32 = scmp.eq.s32.totalorder %s16, 1
      %p33 = por %p31, %p32
      %p34 = scmp.ne.s32.totalorder %s26, %s29
      %p35 = scmp.eq.s32.totalorder %s16, 0
      %p36 = por %p34, %p35
      %p37 = scmp.ne.s32.totalorder %s26, %s29
      %p38 = scmp.eq.s32.totalorder %s21, 1
      %p39 = por %p37, %p38
      %p40 = scmp.ne.s32.totalorder %s29, %s30
      %p41 = scmp.eq.s32.totalorder %s21, 0
      %p42 = por %p40, %p41
      %p43 = scmp.ne.s32.totalorder %s29, %s30
      %p44 = scmp.eq.s32.totalorder %s22, 1
      %p45 = por %p43, %p44
      %p47 = scmp.ne.s32.totalorder %s30, %s46
      %p48 = scmp.eq.s32.totalorder %s22, 0
      %p49 = por %p47, %p48
      %s51 = sadd.s32 %s50, 1
      %p54 = scmp.eq.s32.totalorder %s16, 1
      %p55 = scmp.ne.s32.totalorder %s50, %s52
      %p56 = scmp.eq.s32.totalorder %s16, 0
      %p57 = por %p55, %p56
      %p58 = scmp.ne.s32.totalorder %s50, %s52
      %p59 = scmp.eq.s32.totalorder %s21, 1
      %p60 = por %p58, %p59
      %p61 = scmp.ne.s32.totalorder %s52, %s53
      %p62 = scmp.eq.s32.totalorder %s21, 0
      %p63 = por %p61, %p62
      %p64 = scmp.ne.s32.totalorder %s52, %s53
      %p65 = scmp.eq.s32.totalorder %s22, 1
      %p66 = por %p64, %p65
      %p68 = scmp.ne.s32.totalorder %s53, %s67
      %p69 = scmp.eq.s32.totalorder %s22, 0
      %p70 = por %p68, %p69
      %s72 = sadd.s32 %s71, 1
      %p75 = scmp.eq.s32.totalorder %s16, 1
      %p76 = scmp.ne.s32.totalorder %s71, %s73
      %p77 = scmp.eq.s32.totalorder %s16, 0
      %p78 = por %p76, %p77
      %p79 = scmp.ne.s32.totalorder %s71, %s73
      %p80 = scmp.eq.s32.totalorder %s21, 1
      %p81 = por %p79, %p80
      %p82 = scmp.ne.s32.totalorder %s73, %s74
      %p83 = scmp.eq.s32.totalorder %s21, 0
      %p84 = por %p82, %p83
      %p85 = scmp.ne.s32.totalorder %s73, %s74
      %p86 = scmp.eq.s32.totalorder %s22, 1
      %p87 = por %p85, %p86
      %p89 = scmp.ne.s32.totalorder %s74, %s88
      %p90 = scmp.eq.s32.totalorder %s22, 0
      %p91 = por %p89, %p90
      %s92 = ssub.s32 %s16, %s23
      %p93 = scmp.eq.s32.totalorder %s92, 0
      %s95 = sadd.s32 %s94, 1
      %s96 = scalar_select %p93, %s94, %s95
      %p99 = pneg %p93
      %p100 = scmp.eq.s32.totalorder %s16, 1
      %p101 = por %p99, %p100
      %p102 = scmp.ne.s32.totalorder %s94, %s97
      %p103 = scmp.eq.s32.totalorder %s16, 0
      %p104 = por %p102, %p103
      %p105 = scmp.ne.s32.totalorder %s94, %s97
      %p106 = scmp.eq.s32.totalorder %s21, 1
      %p107 = por %p105, %p106
      %p108 = scmp.ne.s32.totalorder %s97, %s98
      %p109 = scmp.eq.s32.totalorder %s21, 0
      %p110 = por %p108, %p109
      %p111 = scmp.ne.s32.totalorder %s97, %s98
      %p112 = scmp.eq.s32.totalorder %s22, 1
      %p113 = por %p111, %p112
      %p115 = scmp.ne.s32.totalorder %s98, %s114
      %p116 = scmp.eq.s32.totalorder %s22, 0
      %p117 = por %p115, %p116
      %p118 = scmp.le.s32.totalorder 1, %s16
      %p119 = scmp.lt.s32.totalorder %s16, 3
      %p120 = pnand %p118, %p119
      %p121 = pneg %p120
      // Predicated region
      $region9: #{tpu_custom_call.1} parent=5 // pred_check
        _
      $region10: #{tpu_custom_call.1} parent=5 // pred_check_branch
        %123 = sbr.rel (%p120) target = $region12
      $region11: #{tpu_custom_call.1} parent=5 // pred_region
        %s124 = ssub.s32 %s16, 1
        // Predicated region
        $region13: #{tpu_custom_call.1} parent=11 // pred_check
          %p125 = pneg %p63
        $region14: #{tpu_custom_call.1} parent=11 // pred_check_branch
          %127 = sbr.rel (%p125) target = $region16
        $region15: #{tpu_custom_call.1} parent=11 // pred_region
          %s129 = ssub.s32 64, 64
          %130 = vsyncadd [#allocation6], %s129
          %s132 = sshll.u32 [#allocation5], 4
          %s133 = int_to_ptr.vmem [resolvable:$true] %s132
          %135 = dma.hbm_to_vmem [thread:$0]  %s1, 64, %s133, [#allocation6]
        $region16: #{tpu_custom_call.1} parent=11 // pred_fallthru
          _
        // Predicated region
        $region17: #{tpu_custom_call.1} parent=11 // pred_check
          %p136 = pneg %p84
        $region18: #{tpu_custom_call.1} parent=11 // pred_check_branch
          %138 = sbr.rel (%p136) target = $region20
        $region19: #{tpu_custom_call.1} parent=11 // pred_region
          %s140 = ssub.s32 16, 16
          %141 = vsyncadd [#allocation6], %s140
          %s143 = sshll.u32 [#allocation7], 4
          %s144 = int_to_ptr.vmem [resolvable:$true] %s143
          %146 = dma.hbm_to_vmem [thread:$0]  %s2, 16, %s144, [#allocation6]
        $region20: #{tpu_custom_call.1} parent=11 // pred_fallthru
          _
      $region12: #{tpu_custom_call.1} parent=5 // pred_fallthru
        _
      %p147 = scmp.lt.s32.totalorder %s16, 2
      // Predicated region
      $region21: #{tpu_custom_call.1} parent=5 // pred_check
        %p148 = pneg %p147
      $region22: #{tpu_custom_call.1} parent=5 // pred_check_branch
        %150 = sbr.rel (%p148) target = $region24
      $region23: #{tpu_custom_call.1} parent=5 // pred_region
        // Predicated region
        $region25: #{tpu_custom_call.1} parent=23 // pred_check
          %p151 = pneg %p36
        $region26: #{tpu_custom_call.1} parent=23 // pred_check_branch
          %153 = sbr.rel (%p151) target = $region28
        $region27: #{tpu_custom_call.1} parent=23 // pred_region
          %s154 = sand.u32 %s26, 1
          %s155 = scalar_lea.sflag [#allocation3], %s154
          %s156 = sand.u32 %s26, 1
          %s157 = smul.addr %s156, 64
          %s158 = scalar_lea.vmem [#allocation2], %s157
          %s159 = smul.u32 16, %s16
          %s161 = ssub.s32 1024, 1024
          %162 = vsyncadd %s155, %s161
          %s163 = smul.addr %s159, 64
          %s164 = scalar_lea.hbm %s0, %s163
          %s165 = sshll.u32 %s158, 4
          %s166 = int_to_ptr.vmem [resolvable:$true] %s165
          %171 = dma.hbm_to_vmem [thread:$0]  %s164, 1024, %s166, %s155, 64, 64, 4
        $region28: #{tpu_custom_call.1} parent=23 // pred_fallthru
          _
      $region24: #{tpu_custom_call.1} parent=5 // pred_fallthru
        _
      %p172 = scmp.le.s32.totalorder 1, %s16
      %p173 = scmp.lt.s32.totalorder %s16, 3
      %p174 = pnand %p172, %p173
      %p175 = pneg %p174
      // Predicated region
      $region29: #{tpu_custom_call.1} parent=5 // pred_check
        _
      $region30: #{tpu_custom_call.1} parent=5 // pred_check_branch
        %177 = sbr.rel (%p174) target = $region32
      $region31: #{tpu_custom_call.1} parent=5 // pred_region
        %s178 = ssub.s32 %s16, 1
        %s179 = sand.u32 %s29, 1
        %s180 = scalar_lea.sflag [#allocation3], %s179
        %s181 = sand.u32 %s29, 1
        %s182 = smul.addr %s181, 64
        %s183 = scalar_lea.vmem [#allocation2], %s182
        // Predicated region
        $region33: #{tpu_custom_call.1} parent=31 // pred_check
          %p184 = pneg %p42
        $region34: #{tpu_custom_call.1} parent=31 // pred_check_branch
          %186 = sbr.rel (%p184) target = $region36
        $region35: #{tpu_custom_call.1} parent=31 // pred_region
          %187 = dma.done %s180, 1024
        $region36: #{tpu_custom_call.1} parent=31 // pred_fallthru
          _
        // Predicated region
        $region37: #{tpu_custom_call.1} parent=31 // pred_check
          %p188 = pneg %p63
        $region38: #{tpu_custom_call.1} parent=31 // pred_check_branch
          %190 = sbr.rel (%p188) target = $region40
        $region39: #{tpu_custom_call.1} parent=31 // pred_region
          %191 = dma.done [#allocation6], 64
        $region40: #{tpu_custom_call.1} parent=31 // pred_fallthru
          _
        // Predicated region
        $region41: #{tpu_custom_call.1} parent=31 // pred_check
          %p192 = pneg %p84
        $region42: #{tpu_custom_call.1} parent=31 // pred_check_branch
          %194 = sbr.rel (%p192) target = $region44
        $region43: #{tpu_custom_call.1} parent=31 // pred_region
          %195 = dma.done [#allocation6], 16
        $region44: #{tpu_custom_call.1} parent=31 // pred_fallthru
          _
        %s196 = sand.u32 %s29, 1
        %s197 = scalar_lea.sflag [#allocation3], %s196
        %s198 = sand.u32 %s29, 1
        %s199 = smul.addr %s198, 64
        %s200 = scalar_lea.vmem [#allocation2], %s199
        %p201 = pneg %p42
        %p202 = pneg %p39
        %p203 = pneg %p63
        %p204 = pneg %p60
        %p205 = pneg %p84
        %p206 = pneg %p81
        %p207 = pneg %p110
        %p208 = pneg %p107
        %s209 = sand.u32 %s97, 1
        %s210 = scalar_lea.sflag [#allocation4], %s209
        %s211 = sand.u32 %s97, 1
        %s212 = smul.addr %s211, 64
        %s213 = scalar_lea.vmem [#allocation8], %s212
        %s214 = smul.u32 16, %s21
        %s215 = smul.u32 16, %s21
        %v217 = vld [vmem:[%s183] sm:$0xf]
        %v218 = vld [vmem:[%s183 + $0x4] sm:$0xf]
        %v219 = vld [vmem:[%s183 + $0x8] sm:$0xf]
        %v220 = vld [vmem:[%s183 + $0xc] sm:$0xf]
        %v221 = vld [vmem:[%s183 + $0x10] sm:$0xf]
        %v222 = vld [vmem:[%s183 + $0x14] sm:$0xf]
        %v223 = vld [vmem:[%s183 + $0x18] sm:$0xf]
        %v224 = vld [vmem:[%s183 + $0x1c] sm:$0xf]
        %v225 = vld [vmem:[%s183 + $0x20] sm:$0xf]
        %v226 = vld [vmem:[%s183 + $0x24] sm:$0xf]
        %v227 = vld [vmem:[%s183 + $0x28] sm:$0xf]
        %v228 = vld [vmem:[%s183 + $0x2c] sm:$0xf]
        %v229 = vld [vmem:[%s183 + $0x30] sm:$0xf]
        %v230 = vld [vmem:[%s183 + $0x34] sm:$0xf]
        %v231 = vld [vmem:[%s183 + $0x38] sm:$0xf]
        %v232 = vld [vmem:[%s183 + $0x3c] sm:$0xf]
        %v233 = vld [vmem:[#allocation5] sm:$0xf]
        %v234 = vld [vmem:[#allocation7] sm:$0x1]
        %v236 = vlaneseq
        %v237 = vshrl.u32 %v236, 7
        %v238 = vsub.s32 0, %v237
        %v239 = vrot.slane %v234, %v238
        %v257 = vunpack.c.l.b16 %v217
        %v258 = vunpack.c.l.b16 %v218
        %v259 = vunpack.c.l.b16 %v219
        %v260 = vunpack.c.l.b16 %v220
        %v261 = vunpack.c.l.b16 %v221
        %v262 = vunpack.c.l.b16 %v222
        %v263 = vunpack.c.l.b16 %v223
        %v264 = vunpack.c.l.b16 %v224
        %v265 = vunpack.c.l.b16 %v225
        %v266 = vunpack.c.l.b16 %v226
        %v267 = vunpack.c.l.b16 %v227
        %v268 = vunpack.c.l.b16 %v228
        %v269 = vunpack.c.l.b16 %v229
        %v270 = vunpack.c.l.b16 %v230
        %v271 = vunpack.c.l.b16 %v231
        %v272 = vunpack.c.l.b16 %v232
        %v273 = vpack.c.b16 %v258, %v257
        %v274 = vpack.c.b16 %v260, %v259
        %v275 = vpack.c.b16 %v262, %v261
        %v276 = vpack.c.b16 %v264, %v263
        %v277 = vpack.c.b16 %v266, %v265
        %v278 = vpack.c.b16 %v268, %v267
        %v279 = vpack.c.b16 %v270, %v269
        %v280 = vpack.c.b16 %v272, %v271
        %vm281 = vcmask 64512
        %v283 = vsel %vm281, %v273, 0
        %v286 = vsel %vm281, %v274, 0
        %v289 = vsel %vm281, %v275, 0
        %v292 = vsel %vm281, %v276, 0
        %v295 = vsel %vm281, %v277, 0
        %v298 = vsel %vm281, %v278, 0
        %v301 = vsel %vm281, %v279, 0
        %v304 = vsel %vm281, %v280, 0
        %vm306 = vcmask 1043456
        %v308 = vsel %vm306, %v233, 0
        %310 = vmatprep.subr.bf16.mxu0 0
        %311 = vmatpush1.bf16.msra.mxu0 %v308
        %312 = vmatprep.subr.bf16.mxu0 0
        %313 = vmatpush1.bf16.msra.mxu0 0
        %314 = vmatprep.subr.bf16.mxu0 0
        %315 = vmatpush1.bf16.msra.mxu0 0
        %316 = vmatprep.subr.bf16.mxu0 0
        %317 = vmatpush1.bf16.msra.mxu0 0
        %318 = vmatprep.subr.bf16.mxu0 0
        %319 = vmatpush1.bf16.msra.mxu0 0
        %320 = vmatprep.subr.bf16.mxu0 0
        %321 = vmatpush1.bf16.msra.mxu0 0
        %322 = vmatprep.subr.bf16.mxu0 0
        %323 = vmatpush1.bf16.msra.mxu0 0
        %324 = vmatprep.subr.bf16.mxu0 0
        %325 = vmatpush1.bf16.msra.mxu0 0
        %326 = vmatprep.subr.bf16.mxu0 0
        %327 = vmatpush1.bf16.msra.mxu0 0
        %328 = vmatprep.subr.bf16.mxu0 0
        %329 = vmatpush1.bf16.msra.mxu0 0
        %330 = vmatprep.subr.bf16.mxu0 0
        %331 = vmatpush1.bf16.msra.mxu0 0
        %332 = vmatprep.subr.bf16.mxu0 0
        %333 = vmatpush1.bf16.msra.mxu0 0
        %334 = vmatprep.subr.bf16.mxu0 0
        %335 = vmatpush1.bf16.msra.mxu0 0
        %336 = vmatprep.subr.bf16.mxu0 0
        %337 = vmatpush1.bf16.msra.mxu0 0
        %338 = vmatprep.subr.bf16.mxu0 0
        %339 = vmatpush1.bf16.msra.mxu0 0
        %340 = vmatprep.subr.bf16.mxu0 0
        %341 = vmatpush1.bf16.msra.mxu0 0
        %342 = vmatprep.mubr.bf16.mxu0 0
        %343 = vmatmul.mubr.bf16.gmra.mrb[0].mxu0 %v283
        %v344 = vpop.f32.mrb[0].mxu0
        %v345 = vadd.f32 %v239, %v344
        %v346 = vpop.f32.mrb[0].mxu0
        %v347 = vpop.f32.mrb[0].mxu0
        %v348 = vadd.f32 %v239, %v347
        %v349 = vpop.f32.mrb[0].mxu0
        %350 = vmatprep.mubr.bf16.mxu0 0
        %351 = vmatmul.mubr.bf16.gmra.mrb[0].mxu0 %v286
        %v352 = vpop.f32.mrb[0].mxu0
        %v353 = vadd.f32 %v239, %v352
        %v354 = vpop.f32.mrb[0].mxu0
        %v355 = vpop.f32.mrb[0].mxu0
        %v356 = vadd.f32 %v239, %v355
        %v357 = vpop.f32.mrb[0].mxu0
        %358 = vmatprep.mubr.bf16.mxu0 0
        %359 = vmatmul.mubr.bf16.gmra.mrb[0].mxu0 %v289
        %v360 = vpop.f32.mrb[0].mxu0
        %v361 = vadd.f32 %v239, %v360
        %v362 = vpop.f32.mrb[0].mxu0
        %v363 = vpop.f32.mrb[0].mxu0
        %v364 = vadd.f32 %v239, %v363
        %v365 = vpop.f32.mrb[0].mxu0
        %366 = vmatprep.mubr.bf16.mxu0 0
        %367 = vmatmul.mubr.bf16.gmra.mrb[0].mxu0 %v292
        %v368 = vpop.f32.mrb[0].mxu0
        %v369 = vadd.f32 %v239, %v368
        %v370 = vpop.f32.mrb[0].mxu0
        %v371 = vpop.f32.mrb[0].mxu0
        %v372 = vadd.f32 %v239, %v371
        %v373 = vpop.f32.mrb[0].mxu0
        %374 = vmatprep.mubr.bf16.mxu0 0
        %375 = vmatmul.mubr.bf16.gmra.mrb[0].mxu0 %v295
        %v376 = vpop.f32.mrb[0].mxu0
        %v377 = vadd.f32 %v239, %v376
        %v378 = vpop.f32.mrb[0].mxu0
        %v379 = vpop.f32.mrb[0].mxu0
        %v380 = vadd.f32 %v239, %v379
        %v381 = vpop.f32.mrb[0].mxu0
        %382 = vmatprep.mubr.bf16.mxu0 0
        %383 = vmatmul.mubr.bf16.gmra.mrb[0].mxu0 %v298
        %v384 = vpop.f32.mrb[0].mxu0
        %v385 = vadd.f32 %v239, %v384
        %v386 = vpop.f32.mrb[0].mxu0
        %v387 = vpop.f32.mrb[0].mxu0
        %v388 = vadd.f32 %v239, %v387
        %v389 = vpop.f32.mrb[0].mxu0
        %390 = vmatprep.mubr.bf16.mxu0 0
        %391 = vmatmul.mubr.bf16.gmra.mrb[0].mxu0 %v301
        %v392 = vpop.f32.mrb[0].mxu0
        %v393 = vadd.f32 %v239, %v392
        %v394 = vpop.f32.mrb[0].mxu0
        %v395 = vpop.f32.mrb[0].mxu0
        %v396 = vadd.f32 %v239, %v395
        %v397 = vpop.f32.mrb[0].mxu0
        %398 = vmatprep.mubr.bf16.mxu0 0
        %399 = vmatmul.mubr.bf16.gmra.mrb[0].mxu0 %v304
        %v400 = vpop.f32.mrb[0].mxu0
        %v401 = vadd.f32 %v239, %v400
        %v402 = vpop.f32.mrb[0].mxu0
        %v403 = vpop.f32.mrb[0].mxu0
        %v404 = vadd.f32 %v239, %v403
        %v405 = vpop.f32.mrb[0].mxu0
        %406 = vdwg.mxu0
        %v407 = vpack.c.bf16 %v348, %v345
        %v408 = vpack.c.bf16 %v356, %v353
        %v409 = vpack.c.bf16 %v364, %v361
        %v410 = vpack.c.bf16 %v372, %v369
        %v411 = vpack.c.bf16 %v380, %v377
        %v412 = vpack.c.bf16 %v388, %v385
        %v413 = vpack.c.bf16 %v396, %v393
        %v414 = vpack.c.bf16 %v404, %v401
        %v423 = vunpack.c.l.b16 %v407
        %v424 = vunpack.c.h.b16 %v407
        %v425 = vunpack.c.l.b16 %v408
        %v426 = vunpack.c.h.b16 %v408
        %v427 = vunpack.c.l.b16 %v409
        %v428 = vunpack.c.h.b16 %v409
        %v429 = vunpack.c.l.b16 %v410
        %v430 = vunpack.c.h.b16 %v410
        %v431 = vunpack.c.l.b16 %v411
        %v432 = vunpack.c.h.b16 %v411
        %v433 = vunpack.c.l.b16 %v412
        %v434 = vunpack.c.h.b16 %v412
        %v435 = vunpack.c.l.b16 %v413
        %v436 = vunpack.c.h.b16 %v413
        %v437 = vunpack.c.l.b16 %v414
        %v438 = vunpack.c.h.b16 %v414
        %v439 = vpack.c.b16 %v423, %v423
        %v440 = vpack.c.b16 %v424, %v424
        %v441 = vpack.c.b16 %v425, %v425
        %v442 = vpack.c.b16 %v426, %v426
        %v443 = vpack.c.b16 %v427, %v427
        %v444 = vpack.c.b16 %v428, %v428
        %v445 = vpack.c.b16 %v429, %v429
        %v446 = vpack.c.b16 %v430, %v430
        %v447 = vpack.c.b16 %v431, %v431
        %v448 = vpack.c.b16 %v432, %v432
        %v449 = vpack.c.b16 %v433, %v433
        %v450 = vpack.c.b16 %v434, %v434
        %v451 = vpack.c.b16 %v435, %v435
        %v452 = vpack.c.b16 %v436, %v436
        %v453 = vpack.c.b16 %v437, %v437
        %v454 = vpack.c.b16 %v438, %v438
        %vm471 = vcmask 191488
        %472 = vst.msk [vmem:[%s213] sm:$0xf] %vm471, %v439
        %473 = vst.msk [vmem:[%s213 + $0x4] sm:$0xf] %vm471, %v440
        %474 = vst.msk [vmem:[%s213 + $0x8] sm:$0xf] %vm471, %v441
        %475 = vst.msk [vmem:[%s213 + $0xc] sm:$0xf] %vm471, %v442
        %476 = vst.msk [vmem:[%s213 + $0x10] sm:$0xf] %vm471, %v443
        %477 = vst.msk [vmem:[%s213 + $0x14] sm:$0xf] %vm471, %v444
        %478 = vst.msk [vmem:[%s213 + $0x18] sm:$0xf] %vm471, %v445
        %479 = vst.msk [vmem:[%s213 + $0x1c] sm:$0xf] %vm471, %v446
        %480 = vst.msk [vmem:[%s213 + $0x20] sm:$0xf] %vm471, %v447
        %481 = vst.msk [vmem:[%s213 + $0x24] sm:$0xf] %vm471, %v448
        %482 = vst.msk [vmem:[%s213 + $0x28] sm:$0xf] %vm471, %v449
        %483 = vst.msk [vmem:[%s213 + $0x2c] sm:$0xf] %vm471, %v450
        %484 = vst.msk [vmem:[%s213 + $0x30] sm:$0xf] %vm471, %v451
        %485 = vst.msk [vmem:[%s213 + $0x34] sm:$0xf] %vm471, %v452
        %486 = vst.msk [vmem:[%s213 + $0x38] sm:$0xf] %vm471, %v453
        %487 = vst.msk [vmem:[%s213 + $0x3c] sm:$0xf] %vm471, %v454
        %s488 = sand.u32 %s97, 1
        %s489 = scalar_lea.sflag [#allocation4], %s488
        %s490 = sand.u32 %s97, 1
        %s491 = smul.addr %s490, 64
        %s492 = scalar_lea.vmem [#allocation8], %s491
        // Predicated region
        $region45: #{tpu_custom_call.1} parent=31 // pred_check
          %p493 = pneg %p107
        $region46: #{tpu_custom_call.1} parent=31 // pred_check_branch
          %495 = sbr.rel (%p493) target = $region48
        $region47: #{tpu_custom_call.1} parent=31 // pred_region
          %s496 = smul.u32 16, %s21
          %s498 = ssub.s32 1024, 1024
          %499 = vsyncadd %s489, %s498
          %s500 = smul.addr %s496, 64
          %s501 = scalar_lea.hbm %s3, %s500
          %s502 = sshll.u32 %s492, 4
          %s503 = int_to_ptr.vmem [resolvable:$true] %s502
          %508 = dma.vmem_to_hbm [thread:$0]  %s503, 1024, %s501, %s489, 64, 64, 4
        $region48: #{tpu_custom_call.1} parent=31 // pred_fallthru
          _
      $region32: #{tpu_custom_call.1} parent=5 // pred_fallthru
        _
      %p509 = scmp.le.s32.totalorder 2, %s16
      // Predicated region
      $region49: #{tpu_custom_call.1} parent=5 // pred_check
        %p510 = pneg %p509
      $region50: #{tpu_custom_call.1} parent=5 // pred_check_branch
        %512 = sbr.rel (%p510) target = $region52
      $region51: #{tpu_custom_call.1} parent=5 // pred_region
        %s513 = ssub.s32 %s16, 2
        // Predicated region
        $region53: #{tpu_custom_call.1} parent=51 // pred_check
          %p514 = pneg %p113
        $region54: #{tpu_custom_call.1} parent=51 // pred_check_branch
          %516 = sbr.rel (%p514) target = $region56
        $region55: #{tpu_custom_call.1} parent=51 // pred_region
          %s517 = sand.u32 %s98, 1
          %s518 = scalar_lea.sflag [#allocation4], %s517
          %s519 = sand.u32 %s98, 1
          %s520 = smul.addr %s519, 64
          %s521 = scalar_lea.vmem [#allocation8], %s520
          %522 = dma.done %s518, 1024
        $region56: #{tpu_custom_call.1} parent=51 // pred_fallthru
          _
      $region52: #{tpu_custom_call.1} parent=5 // pred_fallthru
        _
    $region6: #{tpu_custom_call.1} parent=1 // loop_footer
      %s20 = sadd.s32 1, %s16
    $region7: #{tpu_custom_call.1} parent=1 // loop_footer_branch
      %15 = sbr.rel target = $region3
    $region8: #{tpu_custom_call.1} parent=1 // loop_exit
      _
    %523 = vsyncpa [#allocation3], 1
    %s524 = scalar_lea.sflag [#allocation3], 1
    %525 = vsyncpa %s524, 1
    %526 = vsyncpa [#allocation6], 1
    %527 = vsyncpa [#allocation4], 1
    %s528 = scalar_lea.sflag [#allocation4], 1
    %529 = vsyncpa %s528, 1

</llo_original>
